<compile_context>
chip_gen: v6e
topology: v6e:2x2x1
jax: 0.10.0
libtpu: 0.0.40
codegen_flags: <defaults>
</compile_context>

<pallas_src>
import math

import jax
import jax.numpy as jnp
from jax.experimental import pallas as pl
from jax.experimental.pallas import tpu as pltpu


HIDDEN = 960  # ESM-C 300m hidden size -> regression_head = nn.Linear(960, 1)


def esmba_kernel(h_ref, m_ref, w_ref, b_ref, o_ref, acc_ref, cnt_ref):
    # h_ref:  (B_TILE, S_TILE, H)  bf16/f32    m_ref: (B_TILE, S_TILE) f32
    # w_ref:  (1, H) f32                        b_ref: (1, 1) f32
    # o_ref:  (B_TILE, 1) f32
    # acc_ref:(B_TILE, H) f32 scratch           cnt_ref:(B_TILE, 1) f32 scratch
    s = pl.program_id(1)

    @pl.when(s == 0)
    def _():
        acc_ref[...] = jnp.zeros_like(acc_ref)
        cnt_ref[...] = jnp.zeros_like(cnt_ref)

    # Cast up AFTER the tile lands in VMEM; accumulate in float32 scratch.
    h = h_ref[...].astype(jnp.float32)                    # (B_TILE, S_TILE, H)
    mask = m_ref[...].astype(jnp.float32)                 # (B_TILE, S_TILE)

    acc_ref[...] += jnp.sum(h * mask[:, :, None], axis=1)           # (B_TILE, H)
    cnt_ref[...] += jnp.sum(mask, axis=1, keepdims=True)            # (B_TILE, 1)

    @pl.when(s == pl.num_programs(1) - 1)
    def _():
        pooled = acc_ref[...] / (cnt_ref[...] + 1e-8)               # (B_TILE, H)
        # Dropout(0.3) is identity in eval mode.
        # Width-1 linear head as a VPU multiply + lane reduce (no MXU / no transpose).
        o_ref[...] = (
            jnp.sum(pooled * w_ref[...], axis=-1, keepdims=True) + b_ref[...]
        )


def esmba_forward(hidden_states, attention_mask, weight, bias):
    """hidden_states: (B, S, 960) bf16 or f32 (backbone output, kept as-is in HBM),
    attention_mask: (B, S), weight: (1, 960), bias: (1,).  Returns (B,) f32."""
    B, S, H = hidden_states.shape
    assert H == HIDDEN

    h = hidden_states                      # do NOT upcast in the wrapper
    m = attention_mask.astype(jnp.float32)
    w = weight.astype(jnp.float32).reshape(1, HIDDEN)
    b2 = bias.astype(jnp.float32).reshape(1, 1)

    # ---- tile selection -------------------------------------------------------
    # S tile: full extent for short sequences, 512 otherwise (fits comfortably in
    # double-buffered VMEM on v7x's 64 MiB and is at the measured HBM-roofline
    # sweet spot on v5e/v6e).  B tile: full extent for small batches, else 8.
    S_TILE = S if S <= 512 else 512
    B_TILE = B if B <= 8 else 8

    B_pad = -(-B // B_TILE) * B_TILE
    S_pad = -(-S // S_TILE) * S_TILE
    if B_pad != B or S_pad != S:
        # Zero-padded tokens have mask == 0, so they contribute nothing.
        h = jnp.pad(h, ((0, B_pad - B), (0, S_pad - S), (0, 0)))
        m = jnp.pad(m, ((0, B_pad - B), (0, S_pad - S)))

    grid = (B_pad // B_TILE, S_pad // S_TILE)

    itemsize = jnp.dtype(h.dtype).itemsize
    hidden_tile_bytes = B_TILE * S_TILE * HIDDEN * itemsize
    mask_tile_bytes = B_TILE * S_TILE * 4
    scratch_bytes = B_TILE * HIDDEN * 4 + B_TILE * 4
    vmem_limit = 2 * (hidden_tile_bytes + mask_tile_bytes) + scratch_bytes + (4 << 20)
    vmem_limit = min(max(vmem_limit, 16 << 20), 48 << 20)

    cost = pl.CostEstimate(
        flops=2 * B_pad * S_pad * HIDDEN,
        transcendentals=0,
        bytes_accessed=B_pad * S_pad * HIDDEN * itemsize
        + B_pad * S_pad * 4
        + B_pad * 4,
    )

    out = pl.pallas_call(
        esmba_kernel,
        out_shape=jax.ShapeDtypeStruct((B_pad, 1), jnp.float32),
        grid_spec=pltpu.PrefetchScalarGridSpec(
            num_scalar_prefetch=0,
            grid=grid,
            in_specs=[
                pl.BlockSpec((B_TILE, S_TILE, HIDDEN), lambda bi, si: (bi, si, 0)),
                pl.BlockSpec((B_TILE, S_TILE), lambda bi, si: (bi, si)),
                pl.BlockSpec((1, HIDDEN), lambda bi, si: (0, 0)),
                pl.BlockSpec((1, 1), lambda bi, si: (0, 0)),
            ],
            out_specs=pl.BlockSpec((B_TILE, 1), lambda bi, si: (bi, 0)),
            scratch_shapes=[
                pltpu.VMEM((B_TILE, HIDDEN), jnp.float32),
                pltpu.VMEM((B_TILE, 1), jnp.float32),
            ],
        ),
        compiler_params=pltpu.CompilerParams(
            dimension_semantics=("parallel", "arbitrary"),
            vmem_limit_bytes=vmem_limit,
        ),
        cost_estimate=cost,
    )(h, m, w, b2)

    return out[:B, 0]  # .squeeze(-1)


def init_params(key):
    """Deterministic init matching the PyTorch module:
       xavier_uniform_(weight, gain=0.01); uniform_(bias, 0.0, 1.0)."""
    kw, kb = jax.random.split(key)
    fan_in, fan_out = HIDDEN, 1
    bound = 0.01 * math.sqrt(6.0 / (fan_in + fan_out))
    weight = jax.random.uniform(kw, (1, HIDDEN), jnp.float32, -bound, bound)
    bias = jax.random.uniform(kb, (1,), jnp.float32, 0.0, 1.0)
    return weight, bias


def reference_forward(hidden_states, attention_mask, weight, bias):
    hidden = hidden_states.astype(jnp.float32)
    mask = attention_mask.astype(jnp.float32)[:, :, None]
    masked = hidden * mask
    pooled = masked.sum(axis=1) / (mask.sum(axis=1) + 1e-8)
    return (pooled @ weight.T + bias)[:, 0]


if __name__ == "__main__":
    key = jax.random.PRNGKey(0)
    k_h, k_p = jax.random.split(key, 2)

    B, S = 2, 8
    # Stand-in for base_model(input_ids).hidden_states[-1] — backbone emits bf16.
    hidden_states = jax.random.normal(k_h, (B, S, HIDDEN), jnp.float32).astype(
        jnp.bfloat16
    )
    # Deterministic attention mask: first 6 / 4 tokens valid.
    lengths = jnp.array([6, 4], dtype=jnp.int32)
    attention_mask = (jnp.arange(S)[None, :] < lengths[:, None]).astype(jnp.float32)

    weight, bias = init_params(k_p)

    out = esmba_forward(hidden_states, attention_mask, weight, bias)
    out = jax.block_until_ready(out)

    ref = reference_forward(hidden_states, attention_mask, weight, bias)
    assert out.shape == (B,)
    assert jnp.allclose(out, ref, atol=1e-5, rtol=1e-5), (out, ref)

    print("KERNEL_OK")
</pallas_src>

<mosaic_0001>
module attributes {stable_mosaic.version = 11 : i64} {
  func.func @esmba_kernel(%arg0: i32, %arg1: i32, %arg2: memref<2x8x960xbf16, #tpu.memory_space<vmem>>, %arg3: memref<2x8xf32, #tpu.memory_space<vmem>>, %arg4: memref<1x960xf32, #tpu.memory_space<vmem>>, %arg5: memref<1x1xf32, #tpu.memory_space<vmem>>, %arg6: memref<2x1xf32, #tpu.memory_space<vmem>>, %arg7: memref<2x960xf32, #tpu.memory_space<vmem>>, %arg8: memref<2x1xf32, #tpu.memory_space<vmem>>) attributes {dimension_semantics = [#tpu.dimension_semantics<parallel>, #tpu.dimension_semantics<arbitrary>], iteration_bounds = array<i64: 1, 1>, scalar_prefetch = 0 : i64, scratch_operands = 2 : i64, tpu.core_type = #tpu.core_type<tc>, window_params = [{transform_indices = @transform_0, window_bounds = array<i64: 2, 8, 960>}, {transform_indices = @transform_1, window_bounds = array<i64: 2, 8>}, {pipeline_mode = #tpu.pipeline_mode<synchronous>, transform_indices = @transform_2, window_bounds = array<i64: 1, 960>}, {pipeline_mode = #tpu.pipeline_mode<synchronous>, transform_indices = @transform_3, window_bounds = array<i64: 1, 1>}, {transform_indices = @transform_4, window_bounds = array<i64: 2, 1>}]} {
    %c0_i32 = arith.constant 0 : i32
    %0 = arith.cmpi eq, %arg1, %c0_i32 : i32
    %1 = arith.extui %0 : i1 to i32
    %c0_i32_0 = arith.constant 0 : i32
    %2 = arith.cmpi ne, %1, %c0_i32_0 : i32
    scf.if %2 {
      %cst_16 = arith.constant 0.000000e+00 : f32
      %21 = vector.broadcast %cst_16 : f32 to vector<2x960xf32>
      %c0_17 = arith.constant 0 : index
      %c0_18 = arith.constant 0 : index
      %22 = vector.load %arg7[%c0_17, %c0_18] : memref<2x960xf32, #tpu.memory_space<vmem>>, vector<2x960xf32>
      tpu.vector_store %arg7[%c0_17, %c0_18], %21 {strides = array<i32>} : memref<2x960xf32, #tpu.memory_space<vmem>>, vector<2x960xf32>,
      %cst_19 = arith.constant 0.000000e+00 : f32
      %23 = vector.broadcast %cst_19 : f32 to vector<2x1xf32>
      %c0_20 = arith.constant 0 : index
      %c0_21 = arith.constant 0 : index
      %24 = vector.load %arg8[%c0_20, %c0_21] : memref<2x1xf32, #tpu.memory_space<vmem>>, vector<2x1xf32>
      tpu.vector_store %arg8[%c0_20, %c0_21], %23 {strides = array<i32>} : memref<2x1xf32, #tpu.memory_space<vmem>>, vector<2x1xf32>,
    } else {
    }
    %c0 = arith.constant 0 : index
    %c0_1 = arith.constant 0 : index
    %c0_2 = arith.constant 0 : index
    %3 = vector.load %arg2[%c0, %c0_1, %c0_2] : memref<2x8x960xbf16, #tpu.memory_space<vmem>>, vector<2x8x960xbf16>
    %4 = arith.extf %3 : vector<2x8x960xbf16> to vector<2x8x960xf32>
    %c0_3 = arith.constant 0 : index
    %c0_4 = arith.constant 0 : index
    %5 = vector.load %arg3[%c0_3, %c0_4] : memref<2x8xf32, #tpu.memory_space<vmem>>, vector<2x8xf32>
    %c0_5 = arith.constant 0 : index
    %c0_6 = arith.constant 0 : index
    %6 = vector.load %arg7[%c0_5, %c0_6] : memref<2x960xf32, #tpu.memory_space<vmem>>, vector<2x960xf32>
    %7 = vector.shape_cast %5 : vector<2x8xf32> to vector<2x8x1xf32>
    %8 = vector.broadcast %7 : vector<2x8x1xf32> to vector<2x8x960xf32>
    %9 = arith.mulf %4, %8 : vector<2x8x960xf32>
    %cst = arith.constant dense<0.000000e+00> : vector<2x960xf32>
    %10 = vector.multi_reduction <add>, %9, %cst [1] : vector<2x8x960xf32> to vector<2x960xf32>
    %11 = arith.addf %6, %10 : vector<2x960xf32>
    %c0_7 = arith.constant 0 : index
    %c0_8 = arith.constant 0 : index
    %12 = vector.load %arg7[%c0_7, %c0_8] : memref<2x960xf32, #tpu.memory_space<vmem>>, vector<2x960xf32>
    tpu.vector_store %arg7[%c0_7, %c0_8], %11 {strides = array<i32>} : memref<2x960xf32, #tpu.memory_space<vmem>>, vector<2x960xf32>,
    %c0_9 = arith.constant 0 : index
    %c0_10 = arith.constant 0 : index
    %13 = vector.load %arg8[%c0_9, %c0_10] : memref<2x1xf32, #tpu.memory_space<vmem>>, vector<2x1xf32>
    %cst_11 = arith.constant dense<0.000000e+00> : vector<2xf32>
    %14 = vector.multi_reduction <add>, %5, %cst_11 [1] : vector<2x8xf32> to vector<2xf32>
    %15 = vector.shape_cast %14 : vector<2xf32> to vector<2x1xf32>
    %16 = arith.addf %13, %15 : vector<2x1xf32>
    %c0_12 = arith.constant 0 : index
    %c0_13 = arith.constant 0 : index
    %17 = vector.load %arg8[%c0_12, %c0_13] : memref<2x1xf32, #tpu.memory_space<vmem>>, vector<2x1xf32>
    tpu.vector_store %arg8[%c0_12, %c0_13], %16 {strides = array<i32>} : memref<2x1xf32, #tpu.memory_space<vmem>>, vector<2x1xf32>,
    %c0_i32_14 = arith.constant 0 : i32
    %18 = arith.cmpi eq, %arg1, %c0_i32_14 : i32
    %19 = arith.extui %18 : i1 to i32
    %c0_i32_15 = arith.constant 0 : i32
    %20 = arith.cmpi ne, %19, %c0_i32_15 : i32
    scf.if %20 {
      %c0_16 = arith.constant 0 : index
      %c0_17 = arith.constant 0 : index
      %21 = vector.load %arg7[%c0_16, %c0_17] : memref<2x960xf32, #tpu.memory_space<vmem>>, vector<2x960xf32>
      %c0_18 = arith.constant 0 : index
      %c0_19 = arith.constant 0 : index
      %22 = vector.load %arg8[%c0_18, %c0_19] : memref<2x1xf32, #tpu.memory_space<vmem>>, vector<2x1xf32>
      %cst_20 = arith.constant 9.99999993E-9 : f32
      %23 = vector.broadcast %cst_20 : f32 to vector<2x1xf32>
      %24 = arith.addf %22, %23 : vector<2x1xf32>
      %25 = vector.broadcast %24 : vector<2x1xf32> to vector<2x960xf32>
      %26 = arith.divf %21, %25 : vector<2x960xf32>
      %c0_21 = arith.constant 0 : index
      %c0_22 = arith.constant 0 : index
      %27 = vector.load %arg4[%c0_21, %c0_22] : memref<1x960xf32, #tpu.memory_space<vmem>>, vector<1x960xf32>
      %28 = vector.broadcast %27 : vector<1x960xf32> to vector<2x960xf32>
      %29 = arith.mulf %26, %28 : vector<2x960xf32>
      %cst_23 = arith.constant dense<0.000000e+00> : vector<2xf32>
      %30 = vector.multi_reduction <add>, %29, %cst_23 [1] : vector<2x960xf32> to vector<2xf32>
      %31 = vector.shape_cast %30 : vector<2xf32> to vector<2x1xf32>
      %c0_24 = arith.constant 0 : index
      %c0_25 = arith.constant 0 : index
      %32 = vector.load %arg5[%c0_24, %c0_25] : memref<1x1xf32, #tpu.memory_space<vmem>>, vector<1x1xf32>
      %33 = vector.broadcast %32 : vector<1x1xf32> to vector<2x1xf32>
      %34 = arith.addf %31, %33 : vector<2x1xf32>
      %c0_26 = arith.constant 0 : index
      %c0_27 = arith.constant 0 : index
      %35 = vector.load %arg6[%c0_26, %c0_27] : memref<2x1xf32, #tpu.memory_space<vmem>>, vector<2x1xf32>
      tpu.vector_store %arg6[%c0_26, %c0_27], %34 {strides = array<i32>} : memref<2x1xf32, #tpu.memory_space<vmem>>, vector<2x1xf32>,
    } else {
    }
    return
  }
  func.func @transform_0(%arg0: i32, %arg1: i32) -> (i32, i32, i32) {
    %c0_i32 = arith.constant 0 : i32
    %c0_i32_0 = arith.constant 0 : i32
    return %arg0, %arg1, %c0_i32 : i32, i32, i32
  }
  func.func @transform_1(%arg0: i32, %arg1: i32) -> (i32, i32) {
    %c0_i32 = arith.constant 0 : i32
    return %arg0, %arg1 : i32, i32
  }
  func.func @transform_2(%arg0: i32, %arg1: i32) -> (i32, i32) {
    %c0_i32 = arith.constant 0 : i32
    %c0_i32_0 = arith.constant 0 : i32
    %c0_i32_1 = arith.constant 0 : i32
    return %c0_i32, %c0_i32_0 : i32, i32
  }
  func.func @transform_3(%arg0: i32, %arg1: i32) -> (i32, i32) {
    %c0_i32 = arith.constant 0 : i32
    %c0_i32_0 = arith.constant 0 : i32
    %c0_i32_1 = arith.constant 0 : i32
    return %c0_i32, %c0_i32_0 : i32, i32
  }
  func.func @transform_4(%arg0: i32, %arg1: i32) -> (i32, i32) {
    %c0_i32 = arith.constant 0 : i32
    %c0_i32_0 = arith.constant 0 : i32
    return %arg0, %c0_i32 : i32, i32
  }
}

</mosaic_0001>

<llo_original>
// kernel: tpu_custom_call.1
$region0: #{tpu_custom_call.1}
  #allocation0 [shape = 'u32[]', space=smem, size = 0x4, offset = 0x4, fixed_abs, tag = 'smem constant byte address 0x4 - core index']
  #allocation1 [shape = 'u32[144,128]{1,0:T(1,128)}', space=vmem, size = 0x12000, scoped, tag = 'internal scratch']
  #allocation2 [shape = 'f32[2,960]{1,0:T(2,128)}', space=vmem, size = 0x2000, scoped, tag = 'scratch operand']
  #allocation3 [shape = 'f32[2,1]{1,0:T(2,128)}', space=vmem, size = 0x400, scoped, tag = 'scratch operand']
  #allocation4 [shape = 'f32[1,1]{1,0:T(1,128)S(1)}', space=vmem, size = 0x200, scoped, tag = 'scoped memory for tpu_custom_call.1']
  %s0 = inlined_call_operand.hbm [shape: bf16[2,8,960], index: 0, kind: input, shape index: {}]
  %s1 = inlined_call_operand.vmem [shape: f32[2,8], index: 1, kind: input, shape index: {}]
  %s2 = inlined_call_operand.hbm [shape: f32[1,960], index: 2, kind: input, shape index: {}]
  %s3 = inlined_call_operand.<no memory space> [shape: f32[1,1], index: 3, kind: input, shape index: {}]
  %s4 = inlined_call_operand.vmem [shape: f32[2,1], index: 4, kind: output, shape index: {}]
  %s5 = sld [smem:[#allocation0]]
  $region42: #{tpu_custom_call.1} parent=0
    _
  %s7 = ssub.s32 1, %s5
  %s8 = scalar_select 0, %s7, %s5
  %v9 = vstv %s3
  %10 = vst [vmem:[#allocation4] sm:$0x1] %v9
  $region1: #{tpu_custom_call.1} parent=0
    #allocation5 [shape = 'u8[32768]{0}', space=vmem, size = 0x8000, scoped, tag = 'input window, operand 0, single buffered']
    #allocation6 [shape = 's32[1]{0}', space=sflag, size = 0x4, scoped, tag = 'scoped memory for tpu_custom_call.1']
    #allocation7 [shape = 'u8[4096]{0}', space=vmem, size = 0x1000, scoped, tag = 'input window, operand 2, single buffered']
    #allocation8 [shape = 's32[1]{0}', space=sflag, size = 0x4, scoped, tag = 'scoped memory for tpu_custom_call.1']
    %11 = vsyncpa [#allocation6], 0
    %12 = vsyncpa [#allocation8], 0
    // Predicated region
    $region2: #{tpu_custom_call.1} parent=1 // pred_check
      _
    $region3: #{tpu_custom_call.1} parent=1 // pred_check_branch
      %14 = sbr.rel (0) target = $region5
    $region4: #{tpu_custom_call.1} parent=1 // pred_region
      %s16 = ssub.s32 1024, 1024
      %17 = vsyncadd [#allocation6], %s16
      %s18 = sshll.u32 [#allocation5], 4
      %s19 = int_to_ptr.vmem [resolvable:$true] %s18
      %24 = dma.hbm_to_vmem [thread:$0]  %s0, 1024, %s19, [#allocation6], 512, 512, 32
    $region5: #{tpu_custom_call.1} parent=1 // pred_fallthru
      _
    // Predicated region
    $region6: #{tpu_custom_call.1} parent=1 // pred_check
      _
    $region7: #{tpu_custom_call.1} parent=1 // pred_check_branch
      %26 = sbr.rel (0) target = $region9
    $region8: #{tpu_custom_call.1} parent=1 // pred_region
      _
    $region9: #{tpu_custom_call.1} parent=1 // pred_fallthru
      _
    // Predicated region
    $region10: #{tpu_custom_call.1} parent=1 // pred_check
      _
    $region11: #{tpu_custom_call.1} parent=1 // pred_check_branch
      %28 = sbr.rel (0) target = $region13
    $region12: #{tpu_custom_call.1} parent=1 // pred_region
      %s30 = ssub.s32 128, 128
      %31 = vsyncadd [#allocation8], %s30
      %s33 = sshll.u32 [#allocation7], 4
      %s34 = int_to_ptr.vmem [resolvable:$true] %s33
      %36 = dma.hbm_to_vmem [thread:$0]  %s2, 128, %s34, [#allocation8]
    $region13: #{tpu_custom_call.1} parent=1 // pred_fallthru
      _
    // Predicated region
    $region14: #{tpu_custom_call.1} parent=1 // pred_check
      _
    $region15: #{tpu_custom_call.1} parent=1 // pred_check_branch
      %38 = sbr.rel (0) target = $region17
    $region16: #{tpu_custom_call.1} parent=1 // pred_region
      _
    $region17: #{tpu_custom_call.1} parent=1 // pred_fallthru
      _
    // Predicated region
    $region18: #{tpu_custom_call.1} parent=1 // pred_check
      _
    $region19: #{tpu_custom_call.1} parent=1 // pred_check_branch
      %40 = sbr.rel (0) target = $region21
    $region20: #{tpu_custom_call.1} parent=1 // pred_region
      %41 = dma.done [#allocation6], 1024
    $region21: #{tpu_custom_call.1} parent=1 // pred_fallthru
      _
    // Predicated region
    $region22: #{tpu_custom_call.1} parent=1 // pred_check
      _
    $region23: #{tpu_custom_call.1} parent=1 // pred_check_branch
      %43 = sbr.rel (0) target = $region25
    $region24: #{tpu_custom_call.1} parent=1 // pred_region
      %44 = dma.done [#allocation8], 128
    $region25: #{tpu_custom_call.1} parent=1 // pred_fallthru
      _
    %p45 = scmp.eq.s32.totalorder 0, 0
    // Predicated region
    $region26: #{tpu_custom_call.1} parent=1 // pred_check
      %p46 = pneg %p45
    $region27: #{tpu_custom_call.1} parent=1 // pred_check_branch
      %48 = sbr.rel (%p46) target = $region29
    $region28: #{tpu_custom_call.1} parent=1 // pred_region
      %49 = vst [vmem:[#allocation2] sm:$0xff] 0.0
      %vm50 = vcmask 1041408
      %vm51 = vcmask 1043458
      %vm52 = vmor %vm51, %vm50
      %vm53 = vcmask 1045508
      %vm54 = vmor %vm53, %vm52
      %vm55 = vcmask 523270
      %vm56 = vmor %vm55, %vm54
      %57 = vst.msk [vmem:[#allocation2 + $0x8] sm:$0xff] %vm56, 0.0
      %vm58 = vcmask 1024
      %59 = vst.msk [vmem:[#allocation3] sm:$0x3] %vm58, 0.0
    $region29: #{tpu_custom_call.1} parent=1 // pred_fallthru
      _
    %v60 = vld [vmem:[#allocation5] sm:$0xff]
    %v61 = vld [vmem:[#allocation5 + $0x8] sm:$0xff]
    %v62 = vld [vmem:[#allocation5 + $0x10] sm:$0xff]
    %v63 = vld [vmem:[#allocation5 + $0x18] sm:$0xff]
    %v64 = vld [vmem:[#allocation5 + $0x20] sm:$0xff]
    %v65 = vld [vmem:[#allocation5 + $0x28] sm:$0xff]
    %v66 = vld [vmem:[#allocation5 + $0x30] sm:$0xff]
    %v67 = vld [vmem:[#allocation5 + $0x38] sm:$0xff]
    %v68 = vunpack.c.l.bf16 %v60
    %v69 = vunpack.c.h.bf16 %v60
    %v70 = vunpack.c.l.bf16 %v61
    %v71 = vunpack.c.h.bf16 %v61
    %v72 = vunpack.c.l.bf16 %v62
    %v73 = vunpack.c.h.bf16 %v62
    %v74 = vunpack.c.l.bf16 %v63
    %v75 = vunpack.c.h.bf16 %v63
    %v76 = vunpack.c.l.bf16 %v64
    %v77 = vunpack.c.h.bf16 %v64
    %v78 = vunpack.c.l.bf16 %v65
    %v79 = vunpack.c.h.bf16 %v65
    %v80 = vunpack.c.l.bf16 %v66
    %v81 = vunpack.c.h.bf16 %v66
    %v82 = vunpack.c.l.bf16 %v67
    %v83 = vunpack.c.h.bf16 %v67
    %v84 = vld [vmem:[%s1] sm:$0x3]
    %v85 = vld [vmem:[#allocation2] sm:$0xff]
    %v86 = vld [vmem:[#allocation2 + $0x8] sm:$0xff]
    %v87 = vlaneseq
    %v88 = vshrl.u32 %v87, 7
    %v89 = vsub.s32 0, %v88
    %v90 = vrot.slane %v84, %v89
    %92 = vbcast.lane.b32.xlu0 %v90, 256
    %v93 = vpop.permute.xlu0 %92
    %v94 = vlaneseq
    %v95 = vshrl.u32 %v94, 7
    %v96 = vsub.s32 1, %v95
    %v97 = vrot.slane %v84, %v96
    %99 = vbcast.lane.b32.xlu0 %v97, 256
    %v100 = vpop.permute.xlu0 %99
    %v101 = vmul.f32 %v68, %v93
    %v102 = vmul.f32 %v69, %v93
    %v103 = vmul.f32 %v70, %v93
    %v104 = vmul.f32 %v71, %v93
    %v105 = vmul.f32 %v72, %v93
    %v106 = vmul.f32 %v73, %v93
    %v107 = vmul.f32 %v74, %v93
    %v108 = vmul.f32 %v75, %v93
    %v109 = vmul.f32 %v76, %v100
    %v110 = vmul.f32 %v77, %v100
    %v111 = vmul.f32 %v78, %v100
    %v112 = vmul.f32 %v79, %v100
    %v113 = vmul.f32 %v80, %v100
    %v114 = vmul.f32 %v81, %v100
    %v115 = vmul.f32 %v82, %v100
    %v116 = vmul.f32 %v83, %v100
    %v117 = vrot.slane %v101, 4
    %v118 = vadd.f32 %v101, %v117
    %v119 = vrot.slane %v118, 2
    %v120 = vadd.f32 %v118, %v119
    %v121 = vrot.slane %v120, 1
    %v122 = vadd.f32 %v120, %v121
    %v123 = vrot.slane %v102, 4
    %v124 = vadd.f32 %v102, %v123
    %v125 = vrot.slane %v124, 2
    %v126 = vadd.f32 %v124, %v125
    %v127 = vrot.slane %v126, 1
    %v128 = vadd.f32 %v126, %v127
    %v129 = vrot.slane %v103, 4
    %v130 = vadd.f32 %v103, %v129
    %v131 = vrot.slane %v130, 2
    %v132 = vadd.f32 %v130, %v131
    %v133 = vrot.slane %v132, 1
    %v134 = vadd.f32 %v132, %v133
    %v135 = vrot.slane %v104, 4
    %v136 = vadd.f32 %v104, %v135
    %v137 = vrot.slane %v136, 2
    %v138 = vadd.f32 %v136, %v137
    %v139 = vrot.slane %v138, 1
    %v140 = vadd.f32 %v138, %v139
    %v141 = vrot.slane %v105, 4
    %v142 = vadd.f32 %v105, %v141
    %v143 = vrot.slane %v142, 2
    %v144 = vadd.f32 %v142, %v143
    %v145 = vrot.slane %v144, 1
    %v146 = vadd.f32 %v144, %v145
    %v147 = vrot.slane %v106, 4
    %v148 = vadd.f32 %v106, %v147
    %v149 = vrot.slane %v148, 2
    %v150 = vadd.f32 %v148, %v149
    %v151 = vrot.slane %v150, 1
    %v152 = vadd.f32 %v150, %v151
    %v153 = vrot.slane %v107, 4
    %v154 = vadd.f32 %v107, %v153
    %v155 = vrot.slane %v154, 2
    %v156 = vadd.f32 %v154, %v155
    %v157 = vrot.slane %v156, 1
    %v158 = vadd.f32 %v156, %v157
    %vm159 = vcmask 523264
    %v160 = vsel %vm159, %v108, 0.0
    %v161 = vrot.slane %v160, 4
    %v162 = vadd.f32 %v160, %v161
    %v163 = vrot.slane %v162, 2
    %v164 = vadd.f32 %v162, %v163
    %v165 = vrot.slane %v164, 1
    %v166 = vadd.f32 %v164, %v165
    %v167 = vrot.slane %v109, 4
    %v168 = vadd.f32 %v109, %v167
    %v169 = vrot.slane %v168, 2
    %v170 = vadd.f32 %v168, %v169
    %v171 = vrot.slane %v170, 1
    %v172 = vadd.f32 %v170, %v171
    %v173 = vrot.slane %v110, 4
    %v174 = vadd.f32 %v110, %v173
    %v175 = vrot.slane %v174, 2
    %v176 = vadd.f32 %v174, %v175
    %v177 = vrot.slane %v176, 1
    %v178 = vadd.f32 %v176, %v177
    %v179 = vrot.slane %v111, 4
    %v180 = vadd.f32 %v111, %v179
    %v181 = vrot.slane %v180, 2
    %v182 = vadd.f32 %v180, %v181
    %v183 = vrot.slane %v182, 1
    %v184 = vadd.f32 %v182, %v183
    %v185 = vrot.slane %v112, 4
    %v186 = vadd.f32 %v112, %v185
    %v187 = vrot.slane %v186, 2
    %v188 = vadd.f32 %v186, %v187
    %v189 = vrot.slane %v188, 1
    %v190 = vadd.f32 %v188, %v189
    %v191 = vrot.slane %v113, 4
    %v192 = vadd.f32 %v113, %v191
    %v193 = vrot.slane %v192, 2
    %v194 = vadd.f32 %v192, %v193
    %v195 = vrot.slane %v194, 1
    %v196 = vadd.f32 %v194, %v195
    %v197 = vrot.slane %v114, 4
    %v198 = vadd.f32 %v114, %v197
    %v199 = vrot.slane %v198, 2
    %v200 = vadd.f32 %v198, %v199
    %v201 = vrot.slane %v200, 1
    %v202 = vadd.f32 %v200, %v201
    %v203 = vrot.slane %v115, 4
    %v204 = vadd.f32 %v115, %v203
    %v205 = vrot.slane %v204, 2
    %v206 = vadd.f32 %v204, %v205
    %v207 = vrot.slane %v206, 1
    %v208 = vadd.f32 %v206, %v207
    %v209 = vsel %vm159, %v116, 0.0
    %v210 = vrot.slane %v209, 4
    %v211 = vadd.f32 %v209, %v210
    %v212 = vrot.slane %v211, 2
    %v213 = vadd.f32 %v211, %v212
    %v214 = vrot.slane %v213, 1
    %v215 = vadd.f32 %v213, %v214
    %v232 = vcombine.low %v122, %v128
    %v233 = vcombine.low %v134, %v140
    %v235 = vunpack.c.l.s4 1983009808
    %v236 = vunpack.c.0.s8 %v235
    %v237 = vlaneseq
    %v238 = vshrl.u32 %v237, 7
    %v239 = vsub.s32 %v236, %v238
    %v240 = vrot.slane %v232, %v239
    %v242 = vunpack.c.l.s4 1983009808
    %v243 = vunpack.c.0.s8 %v242
    %v244 = vlaneseq
    %v245 = vshrl.u32 %v244, 7
    %v246 = vsub.s32 %v243, %v245
    %v247 = vrot.slane %v233, %v246
    %v248 = vcombine.low %v240, %v247
    %v249 = vcombine.low %v146, %v152
    %v250 = vcombine.low %v158, %v166
    %v252 = vunpack.c.l.s4 1983009808
    %v253 = vunpack.c.0.s8 %v252
    %v254 = vlaneseq
    %v255 = vshrl.u32 %v254, 7
    %v256 = vsub.s32 %v253, %v255
    %v257 = vrot.slane %v249, %v256
    %v259 = vunpack.c.l.s4 1983009808
    %v260 = vunpack.c.0.s8 %v259
    %v261 = vlaneseq
    %v262 = vshrl.u32 %v261, 7
    %v263 = vsub.s32 %v260, %v262
    %v264 = vrot.slane %v250, %v263
    %v265 = vcombine.low %v257, %v264
    %v266 = vcombine.low %v172, %v178
    %v267 = vcombine.low %v184, %v190
    %v269 = vunpack.c.l.s4 1983009808
    %v270 = vunpack.c.0.s8 %v269
    %v271 = vlaneseq
    %v272 = vshrl.u32 %v271, 7
    %v273 = vsub.s32 %v270, %v272
    %v274 = vrot.slane %v266, %v273
    %v276 = vunpack.c.l.s4 1983009808
    %v277 = vunpack.c.0.s8 %v276
    %v278 = vlaneseq
    %v279 = vshrl.u32 %v278, 7
    %v280 = vsub.s32 %v277, %v279
    %v281 = vrot.slane %v267, %v280
    %v282 = vcombine.low %v274, %v281
    %v283 = vcombine.low %v196, %v202
    %v284 = vcombine.low %v208, %v215
    %v286 = vunpack.c.l.s4 1983009808
    %v287 = vunpack.c.0.s8 %v286
    %v288 = vlaneseq
    %v289 = vshrl.u32 %v288, 7
    %v290 = vsub.s32 %v287, %v289
    %v291 = vrot.slane %v283, %v290
    %v293 = vunpack.c.l.s4 1983009808
    %v294 = vunpack.c.0.s8 %v293
    %v295 = vlaneseq
    %v296 = vshrl.u32 %v295, 7
    %v297 = vsub.s32 %v294, %v296
    %v298 = vrot.slane %v284, %v297
    %v299 = vcombine.low %v291, %v298
    %vm300 = vcmask 1044484
    %v301 = vsel %vm300, %v248, %v248
    %vm302 = vcmask 1046534
    %v303 = vsel %vm302, %v248, %v301
    %v304 = vrot.slane %v282, 7
    %vm305 = vcmask 1041409
    %v306 = vsel %vm305, %v304, %v303
    %vm307 = vcmask 1043459
    %v308 = vsel %vm307, %v304, %v306
    %vm309 = vcmask 1045509
    %v310 = vsel %vm309, %v304, %v308
    %vm311 = vcmask 1047559
    %v312 = vsel %vm311, %v304, %v310
    %v313 = vsel %vm300, %v265, %v265
    %v314 = vsel %vm302, %v265, %v313
    %v315 = vrot.slane %v299, 7
    %v316 = vsel %vm305, %v315, %v314
    %v317 = vsel %vm307, %v315, %v316
    %v318 = vsel %vm309, %v315, %v317
    %v319 = vsel %vm311, %v315, %v318
    %v322 = vadd.f32 %v85, %v312
    %v323 = vadd.f32 %v86, %v319
    %324 = vst [vmem:[#allocation2] sm:$0xff] %v322
    %vm325 = vcmask 1041408
    %vm326 = vcmask 1043458
    %vm327 = vmor %vm326, %vm325
    %vm328 = vcmask 1045508
    %vm329 = vmor %vm328, %vm327
    %vm330 = vcmask 523270
    %vm331 = vmor %vm330, %vm329
    %332 = vst.msk [vmem:[#allocation2 + $0x8] sm:$0xff] %vm331, %v323
    %v333 = vld [vmem:[#allocation3] sm:$0x3]
    %vm334 = vcmask 58368
    %v335 = vsel %vm334, %v84, 0.0
    %336 = vadd.xlane.f32.xlu0 %v335
    %v337 = vpop.xlane.xlu0 %336
    %v338 = vadd.f32 %v333, %v337
    %vm339 = vcmask 1024
    %340 = vst.msk [vmem:[#allocation3] sm:$0x3] %vm339, %v338
    // Predicated region
    $region30: #{tpu_custom_call.1} parent=1 // pred_check
      %p341 = pneg %p45
    $region31: #{tpu_custom_call.1} parent=1 // pred_check_branch
      %343 = sbr.rel (%p341) target = $region33
    $region32: #{tpu_custom_call.1} parent=1 // pred_region
      %v344 = vld [vmem:[#allocation2] sm:$0xff]
      %v345 = vld [vmem:[#allocation2 + $0x8] sm:$0xff]
      %v346 = vld [vmem:[#allocation3] sm:$0x3]
      %v347 = vadd.f32 %v346, 1e-08
      %349 = vset.pattern.permute.xlu0 0
      %350 = vperm.xlu0 %349, %v347
      %v351 = vpop.permute.xlu0 %350
      %v353 = vunpack.c.l.s4 269488144
      %v354 = vunpack.c.0.s8 %v353
      %v355 = vlaneseq
      %v356 = vshrl.u32 %v355, 7
      %v357 = vsub.s32 %v354, %v356
      %v358 = vrot.slane %v351, %v357
      %v360 = vrcp.pop %v358
      %v361 = vmul.f32 %v344, %v360
      %v362 = vmul.f32 %v345, %v360
      %v363 = vld [vmem:[#allocation7] sm:$0xff]
      %v365 = vlaneseq
      %v366 = vshrl.u32 %v365, 7
      %v367 = vsub.s32 0, %v366
      %v368 = vrot.slane %v363, %v367
      %v369 = vlaneseq
      %v370 = vshrl.u32 %v369, 7
      %v371 = vsub.s32 1, %v370
      %v372 = vrot.slane %v363, %v371
      %v373 = vlaneseq
      %v374 = vshrl.u32 %v373, 7
      %v375 = vsub.s32 2, %v374
      %v376 = vrot.slane %v363, %v375
      %v377 = vlaneseq
      %v378 = vshrl.u32 %v377, 7
      %v379 = vsub.s32 3, %v378
      %v380 = vrot.slane %v363, %v379
      %v381 = vlaneseq
      %v382 = vshrl.u32 %v381, 7
      %v383 = vsub.s32 4, %v382
      %v384 = vrot.slane %v363, %v383
      %v385 = vlaneseq
      %v386 = vshrl.u32 %v385, 7
      %v387 = vsub.s32 5, %v386
      %v388 = vrot.slane %v363, %v387
      %v389 = vlaneseq
      %v390 = vshrl.u32 %v389, 7
      %v391 = vsub.s32 6, %v390
      %v392 = vrot.slane %v363, %v391
      %v393 = vlaneseq
      %v394 = vshrl.u32 %v393, 7
      %v395 = vsub.s32 7, %v394
      %v396 = vrot.slane %v363, %v395
      %v397 = vcombine.low %v368, %v372
      %v398 = vcombine.low %v376, %v380
      %v400 = vunpack.c.l.s4 1983009808
      %v401 = vunpack.c.0.s8 %v400
      %v402 = vlaneseq
      %v403 = vshrl.u32 %v402, 7
      %v404 = vsub.s32 %v401, %v403
      %v405 = vrot.slane %v397, %v404
      %v407 = vunpack.c.l.s4 1983009808
      %v408 = vunpack.c.0.s8 %v407
      %v409 = vlaneseq
      %v410 = vshrl.u32 %v409, 7
      %v411 = vsub.s32 %v408, %v410
      %v412 = vrot.slane %v398, %v411
      %v413 = vcombine.low %v405, %v412
      %v414 = vcombine.low %v384, %v388
      %v415 = vcombine.low %v392, %v396
      %v417 = vunpack.c.l.s4 1983009808
      %v418 = vunpack.c.0.s8 %v417
      %v419 = vlaneseq
      %v420 = vshrl.u32 %v419, 7
      %v421 = vsub.s32 %v418, %v420
      %v422 = vrot.slane %v414, %v421
      %v424 = vunpack.c.l.s4 1983009808
      %v425 = vunpack.c.0.s8 %v424
      %v426 = vlaneseq
      %v427 = vshrl.u32 %v426, 7
      %v428 = vsub.s32 %v425, %v427
      %v429 = vrot.slane %v415, %v428
      %v430 = vcombine.low %v422, %v429
      %v433 = vmul.f32 %v361, %v413
      %v434 = vmul.f32 %v362, %v430
      %v437 = vcombine.high %v433, %v433
      %v439 = vunpack.c.l.s4 1983009808
      %v440 = vunpack.c.0.s8 %v439
      %v441 = vlaneseq
      %v442 = vshrl.u32 %v441, 7
      %v443 = vsub.s32 %v440, %v442
      %v444 = vrot.slane %v433, %v443
      %v446 = vunpack.c.l.s4 1983009808
      %v447 = vunpack.c.0.s8 %v446
      %v448 = vlaneseq
      %v449 = vshrl.u32 %v448, 7
      %v450 = vsub.s32 %v447, %v449
      %v451 = vrot.slane %v437, %v450
      %v452 = vcombine.high %v444, %v444
      %v453 = vcombine.high %v451, %v451
      %v454 = vcombine.high %v434, %v434
      %v456 = vunpack.c.l.s4 1983009808
      %v457 = vunpack.c.0.s8 %v456
      %v458 = vlaneseq
      %v459 = vshrl.u32 %v458, 7
      %v460 = vsub.s32 %v457, %v459
      %v461 = vrot.slane %v434, %v460
      %v463 = vunpack.c.l.s4 1983009808
      %v464 = vunpack.c.0.s8 %v463
      %v465 = vlaneseq
      %v466 = vshrl.u32 %v465, 7
      %v467 = vsub.s32 %v464, %v466
      %v468 = vrot.slane %v454, %v467
      %v469 = vcombine.high %v461, %v461
      %v470 = vcombine.high %v468, %v468
      %v479 = vsel %vm325, %v444, 0.0
      %v480 = vsel %vm325, %v452, 0.0
      %v481 = vadd.f32 %v479, %v480
      %v482 = vsel %vm325, %v451, 0.0
      %v483 = vadd.f32 %v481, %v482
      %v484 = vsel %vm325, %v453, 0.0
      %v485 = vadd.f32 %v483, %v484
      %v486 = vsel %vm325, %v461, 0.0
      %v487 = vadd.f32 %v485, %v486
      %v488 = vsel %vm325, %v469, 0.0
      %v489 = vadd.f32 %v487, %v488
      %v490 = vsel %vm325, %v468, 0.0
      %v491 = vadd.f32 %v489, %v490
      %vm492 = vcmask 517120
      %v493 = vsel %vm492, %v470, 0.0
      %v494 = vadd.f32 %v491, %v493
      %495 = vadd.xlane.f32.xlu0 %v494
      %v496 = vpop.xlane.xlu0 %495
      %v497 = vld [vmem:[#allocation4] sm:$0x1]
      %v499 = vlaneseq
      %v500 = vshrl.u32 %v499, 7
      %v501 = vsub.s32 0, %v500
      %v502 = vrot.slane %v497, %v501
      %v504 = vadd.f32 %v496, %v502
      %505 = vst.msk [vmem:[%s4] sm:$0x3] %vm339, %v504
    $region33: #{tpu_custom_call.1} parent=1 // pred_fallthru
      _
    // Predicated region
    $region34: #{tpu_custom_call.1} parent=1 // pred_check
      _
    $region35: #{tpu_custom_call.1} parent=1 // pred_check_branch
      %507 = sbr.rel (0) target = $region37
    $region36: #{tpu_custom_call.1} parent=1 // pred_region
      _
    $region37: #{tpu_custom_call.1} parent=1 // pred_fallthru
      _
    // Predicated region
    $region38: #{tpu_custom_call.1} parent=1 // pred_check
      _
    $region39: #{tpu_custom_call.1} parent=1 // pred_check_branch
      %509 = sbr.rel (0) target = $region41
    $region40: #{tpu_custom_call.1} parent=1 // pred_region
      _
    $region41: #{tpu_custom_call.1} parent=1 // pred_fallthru
      _
    %510 = vsyncpa [#allocation6], 1
    %511 = vsyncpa [#allocation8], 1

</llo_original>
